<compile_context>
chip_gen: v7x
topology: tpu7x:2x2x1
jax: 0.10.0
libtpu: 0.0.40
codegen_flags: <defaults>
</compile_context>

<pallas_src>
import functools

import jax
import jax.numpy as jnp
from jax.experimental import pallas as pl
from jax.experimental.pallas import tpu as pltpu


def pair(t):
    return t if isinstance(t, tuple) else (t, t)


def _round_up(x, m):
    return ((x + m - 1) // m) * m


# ----------------------------- device heuristics --------------------------- #

def _device_kind():
    try:
        return jax.devices()[0].device_kind.lower()
    except Exception:
        return ""


def _is_v5e(kind):
    return "v5" in kind and ("lite" in kind or "5e" in kind)


def _default_token_tile():
    kind = _device_kind()
    if _is_v5e(kind):
        return 128      # v5e: 1 vst slot, no bf16 VPU, 4x128x128 MXU
    if "v6" in kind or "v7" in kind:
        return 512      # mem-bound: big tiles amortize ~0.35us per grid step
    return 256


def _default_vmem_budget():
    kind = _device_kind()
    if _is_v5e(kind):
        return 14 << 20     # v5e scoped-VMEM default is 16 MiB
    return 24 << 20         # stays under v7x's 32 MiB scoped default


def _vmem_bytes(tm, pd, dim_p, single_buffer_consts):
    """Rough estimate of the pipelined working set."""
    x_t = tm * pd * 2                       # bf16 token tile
    pos_t = tm * dim_p * 4
    out_t = tm * dim_p * 4
    consts = pd * dim_p * 2 + 2 * pd * 4 + 4 * dim_p * 4
    cbuf = 1 if single_buffer_consts else 2
    return 2 * (x_t + pos_t + out_t) + cbuf * consts


# ----------------- probe: can constants be single-buffered? ---------------- #

_BUFFERED_CONSTS_OK = None


def _buffered_consts_supported():
    """Probe (once, eagerly) whether pipeline_mode=pl.Buffered(1) works, so the
    never-changing operands (W, biases, LN params) can be single-buffered
    (saves VMEM, mainly on v7x's 64 MiB VMEM)."""
    global _BUFFERED_CONSTS_OK
    if _BUFFERED_CONSTS_OK is not None:
        return _BUFFERED_CONSTS_OK

    def _probe_kernel(x_ref, o_ref):
        o_ref[...] = x_ref[...] + 1.0

    try:
        spec = pl.BlockSpec((8, 128), lambda i: (0, 0),
                            pipeline_mode=pl.Buffered(1))
        out = pl.pallas_call(
            _probe_kernel,
            out_shape=jax.ShapeDtypeStruct((16, 128), jnp.float32),
            grid_spec=pltpu.PrefetchScalarGridSpec(
                num_scalar_prefetch=0, grid=(2,),
                in_specs=[spec],
                out_specs=pl.BlockSpec((8, 128), lambda i: (i, 0))),
        )(jnp.zeros((8, 128), jnp.float32))
        jax.block_until_ready(out)
        _BUFFERED_CONSTS_OK = True
    except Exception:
        _BUFFERED_CONSTS_OK = False
    return _BUFFERED_CONSTS_OK


# ------------------------------- Pallas kernel ------------------------------ #

def _embed_kernel(x_ref, g1_ref, b1_ref, w_ref, bl_ref, g2_ref, b2_ref,
                  pos_ref, o_ref, *, inv_dim):
    """(tm, patch_dim) token tile -> (tm, dim_p) embedded tile.

    All LayerNorm math is f32 (v5e has no bf16 VPU); the Linear runs on the MXU
    with bf16 operands and an f32 accumulator.  When dim_p > dim, the padded
    columns of W / bias / gamma2 / beta2 / pos are exactly zero, so y's padded
    columns are zero and sum(y) / sum(y*y) over all dim_p columns equal the
    sums over the true `dim` columns -- which is what makes the one-pass LN2
    below exact (no iota/where masking needed).
    """
    x = x_ref[...].astype(jnp.float32)                      # (tm, pd)

    # LayerNorm(patch_dim), torch numerics (biased var, eps=1e-5).
    mu = jnp.mean(x, axis=-1, keepdims=True)
    xc = x - mu
    var = jnp.mean(xc * xc, axis=-1, keepdims=True)
    xn = xc * jax.lax.rsqrt(var + 1e-5) * g1_ref[...] + b1_ref[...]

    # Linear(patch_dim -> dim): bf16 MXU operands, f32 accumulator.
    y = jnp.dot(xn.astype(jnp.bfloat16), w_ref[...],
                preferred_element_type=jnp.float32)
    y = y + bl_ref[...]                                     # padded cols stay 0

    # LayerNorm(dim) via E[y^2] - mu^2 over the true `dim` (see docstring).
    mu2 = jnp.sum(y, axis=-1, keepdims=True) * inv_dim
    var2 = jnp.sum(y * y, axis=-1, keepdims=True) * inv_dim - mu2 * mu2
    var2 = jnp.maximum(var2, 0.0)
    yn = (y - mu2) * jax.lax.rsqrt(var2 + 1e-5) * g2_ref[...] + b2_ref[...]

    # + positional embedding (Dropout p=0.0 is identity); padded cols stay 0.
    o_ref[...] = (yn + pos_ref[...]).astype(o_ref.dtype)


def patch_embed_pallas(x, g1, b1, w, bl, g2, b2, pos, *, dim, tm,
                       single_buffer_consts=False):
    """x: (b, n, patch_dim) bf16 tokens -> (b, n, dim_p) f32 embeddings."""
    b, n, pd = x.shape
    dim_p = w.shape[1]
    nt = pl.cdiv(n, tm)     # partial last tile handled by Pallas (masked store)

    if single_buffer_consts:
        def const_spec(shape):
            return pl.BlockSpec(shape, lambda ti, bi: (0,) * len(shape),
                                pipeline_mode=pl.Buffered(1))
    else:
        def const_spec(shape):
            return pl.BlockSpec(shape, lambda ti, bi: (0,) * len(shape))

    kernel = functools.partial(_embed_kernel, inv_dim=1.0 / dim)
    return pl.pallas_call(
        kernel,
        out_shape=jax.ShapeDtypeStruct((b, n, dim_p), jnp.float32),
        grid_spec=pltpu.PrefetchScalarGridSpec(
            num_scalar_prefetch=0,
            # Token tiles outermost, batch innermost: the pos tile's block index
            # only depends on ti, so Pallas skips its re-DMA across the inner
            # batch steps (no jnp.tile, no redundant HBM reads of pos).
            grid=(nt, b),
            in_specs=[
                pl.BlockSpec((None, tm, pd), lambda ti, bi: (bi, ti, 0)),  # x
                const_spec((1, pd)),            # LN1 gamma (kernel order)
                const_spec((1, pd)),            # LN1 beta  (kernel order)
                const_spec((pd, dim_p)),        # W bf16 (kernel order, 0-padded)
                const_spec((1, dim_p)),         # linear bias (0-padded)
                const_spec((1, dim_p)),         # LN2 gamma (0-padded)
                const_spec((1, dim_p)),         # LN2 beta  (0-padded)
                pl.BlockSpec((tm, dim_p), lambda ti, bi: (ti, 0)),         # pos
            ],
            out_specs=pl.BlockSpec((None, tm, dim_p), lambda ti, bi: (bi, ti, 0)),
        ),
        compiler_params=pltpu.CompilerParams(
            dimension_semantics=("parallel", "parallel")),
    )(x, g1, b1, w, bl, g2, b2, pos)


# ------------------------------- glue (JAX) --------------------------------- #

def nearest_resize_3d(video, out_d, out_h, out_w):
    """PyTorch F.interpolate(..., mode='nearest') on NCDHW: src = floor(dst*in/out)."""
    _, _, D, H, W = video.shape
    x = video
    if out_d != D:
        x = jnp.take(x, (jnp.arange(out_d) * D // out_d).astype(jnp.int32), axis=2)
    if out_h != H:
        x = jnp.take(x, (jnp.arange(out_h) * H // out_h).astype(jnp.int32), axis=3)
    if out_w != W:
        x = jnp.take(x, (jnp.arange(out_w) * W // out_w).astype(jnp.int32), axis=4)
    return x


def rearrange_to_patches_kernel_order(x, pf, p1, p2):
    """'b c (f pf) (h p1) (w p2) -> b (f h w) (c pf p1 p2)'.

    Keeps p2 (contiguous width) as the minor feature axis -> much cheaper XLA
    transpose than torch's (p1 p2 pf c) (c=3 minor is a worst-case gather).
    LN statistics are permutation invariant; gamma1/beta1 and the Linear's
    input rows are permuted once at init so the math matches torch exactly.
    """
    b, c, Fd, H, W = x.shape
    f, h, w = Fd // pf, H // p1, W // p2
    x = x.reshape(b, c, f, pf, h, p1, w, p2)
    x = jnp.transpose(x, (0, 2, 4, 6, 1, 3, 5, 7))        # b f h w c pf p1 p2
    return x.reshape(b, f * h * w, c * pf * p1 * p2)


def rearrange_to_patches_torch_order(x, pf, p1, p2):
    """'b c (f pf) (h p1) (w p2) -> b (f h w) (p1 p2 pf c)'  (reference only)."""
    b, c, Fd, H, W = x.shape
    f, h, w = Fd // pf, H // p1, W // p2
    x = x.reshape(b, c, f, pf, h, p1, w, p2)
    x = jnp.transpose(x, (0, 2, 4, 6, 5, 7, 3, 1))        # b f h w p1 p2 pf c
    return x.reshape(b, f * h * w, p1 * p2 * pf * c)


# --------------------------------- module ----------------------------------- #

class AdditionalVideoTokensPallas:
    def __init__(self, image_size, image_patch_size, frames, frame_patch_size,
                 dim, channels=3, emb_dropout=0.0, token_tile=None,
                 key=jax.random.PRNGKey(0)):
        image_height, image_width = pair(image_size // 2)
        patch_height, patch_width = pair(image_patch_size)
        assert image_height % patch_height == 0 and image_width % patch_width == 0
        assert frames % frame_patch_size == 0
        num_patches = ((image_height // patch_height) * (image_width // patch_width)
                       * (frames // frame_patch_size))
        patch_dim = channels * patch_height * patch_width * frame_patch_size

        self.image_size = image_size
        self.frames = frames
        self.patch_height, self.patch_width = patch_height, patch_width
        self.frame_patch_size = frame_patch_size
        self.channels = channels
        self.dim = dim
        self.patch_dim = patch_dim
        self.num_patches = num_patches
        # Lane-dense output width only when it does not inflate HBM traffic:
        # dim <= 128 or dim % 128 == 0 -> dim_p == dim (no pad, no slice copy).
        self.dim_p = dim if (dim <= 128 or dim % 128 == 0) else _round_up(dim, 128)
        self.token_tile = (token_tile if token_tile is not None
                           else _default_token_tile())
        self.vmem_budget = _default_vmem_budget()
        self.single_buffer_consts = _buffered_consts_supported()
        # emb_dropout == 0.0 -> identity at inference; nothing to do.

        # ---- torch-layout parameters (as nn.LayerNorm / nn.Linear hold them) ----
        k_w, k_b, k_pos = jax.random.split(key, 3)
        self.ln1_g_t = jnp.ones((patch_dim,), jnp.float32)
        self.ln1_b_t = jnp.zeros((patch_dim,), jnp.float32)
        bound = 1.0 / float(patch_dim) ** 0.5
        self.w_t = jax.random.uniform(k_w, (patch_dim, dim), jnp.float32, -bound, bound)
        self.lin_b = jax.random.uniform(k_b, (dim,), jnp.float32, -bound, bound)
        self.ln2_g = jnp.ones((dim,), jnp.float32)
        self.ln2_b = jnp.zeros((dim,), jnp.float32)
        self.pos = jax.random.normal(k_pos, (num_patches, dim), jnp.float32)

        # ---- kernel-layout (permuted + zero-padded) parameters ----
        # perm[j] = torch feature index of the feature at kernel position j,
        # where torch order is (p1 p2 pf c) and kernel order is (c pf p1 p2).
        perm = (jnp.arange(patch_dim)
                .reshape(patch_height, patch_width, frame_patch_size, channels)
                .transpose(3, 2, 0, 1).reshape(patch_dim))
        dim_p = self.dim_p
        self.g1_k = self.ln1_g_t[perm].reshape(1, patch_dim)
        self.b1_k = self.ln1_b_t[perm].reshape(1, patch_dim)
        w_pad = (jnp.zeros((patch_dim, dim_p), jnp.float32)
                 .at[:, :dim].set(self.w_t[perm]))
        self.w_k = w_pad.astype(jnp.bfloat16)                 # bf16 MXU operand
        self.bl_k = jnp.zeros((1, dim_p), jnp.float32).at[:, :dim].set(self.lin_b)
        self.g2_k = jnp.zeros((1, dim_p), jnp.float32).at[:, :dim].set(self.ln2_g)
        self.b2_k = jnp.zeros((1, dim_p), jnp.float32).at[:, :dim].set(self.ln2_b)
        self.pos_k = (jnp.zeros((num_patches, dim_p), jnp.float32)
                      .at[:, :dim].set(self.pos))
        if dim_p != dim:
            # Invariant required by the one-pass LN2 and by slicing [:dim]:
            # all padded columns must be exactly zero.
            assert bool(jnp.all(self.w_k[:, dim:] == 0))
            assert bool(jnp.all(self.g2_k[:, dim:] == 0))

    def _pick_token_tile(self, b, n, pd):
        tm = min(self.token_tile, n)
        # Fit the double-buffered working set into a conservative VMEM budget.
        while tm > 16 and _vmem_bytes(tm, pd, self.dim_p,
                                      self.single_buffer_consts) > self.vmem_budget:
            tm = max(16, tm // 2)
        # Ensure >= 2 grid steps so both v7x TensorCores get work.
        if b * pl.cdiv(n, tm) < 2 and n >= 32:
            tm = max(16, (n // 2 // 16) * 16)
        if tm < n:
            tm = max(16, (tm // 16) * 16)   # bf16 sublane tiling is (16, 128)
        return tm

    def __call__(self, video):
        out_hw = self.image_size // 2
        # Stream the hot path in bf16 (halves the dominant HBM traffic); all
        # LayerNorm math inside the kernel stays f32.
        x = nearest_resize_3d(video.astype(jnp.bfloat16), self.frames,
                              out_hw, out_hw)
        x = rearrange_to_patches_kernel_order(x, self.frame_patch_size,
                                              self.patch_height, self.patch_width)
        b, n, pd = x.shape
        assert n == self.num_patches and pd == self.patch_dim

        tm = self._pick_token_tile(b, n, pd)
        out = patch_embed_pallas(x, self.g1_k, self.b1_k, self.w_k, self.bl_k,
                                 self.g2_k, self.b2_k, self.pos_k,
                                 dim=self.dim, tm=tm,
                                 single_buffer_consts=self.single_buffer_consts)
        if self.dim_p != self.dim:
            out = out[..., :self.dim]    # only when dim > 128 and dim % 128 != 0
        return out


# ----------------------------- pure-JAX reference --------------------------- #

def reference_forward(module, video):
    """Torch-ordering reference with the SAME bf16 quantization of x / W / xn
    as the kernel path (apples-to-apples kernel-vs-JAX check; a pure-f32 torch
    reference differs at the ~1e-2 level because of the deliberate bf16 MXU
    operands)."""
    out_hw = module.image_size // 2
    x = nearest_resize_3d(video.astype(jnp.bfloat16), module.frames, out_hw, out_hw)
    x = rearrange_to_patches_torch_order(x, module.frame_patch_size,
                                         module.patch_height, module.patch_width)
    x = x.astype(jnp.float32)

    def ln(v, g, b):
        mu = jnp.mean(v, -1, keepdims=True)
        var = jnp.mean(jnp.square(v - mu), -1, keepdims=True)
        return (v - mu) * jax.lax.rsqrt(var + 1e-5) * g + b

    xn = ln(x, module.ln1_g_t, module.ln1_b_t)
    w = module.w_t.astype(jnp.bfloat16).astype(jnp.float32)
    y = xn.astype(jnp.bfloat16).astype(jnp.float32) @ w + module.lin_b
    y = ln(y, module.ln2_g, module.ln2_b)
    return y + module.pos[None]


# --------------------------------- main -------------------------------------- #

if __name__ == "__main__":
    key = jax.random.PRNGKey(0)
    k_vid, k_params = jax.random.split(key)

    # Small, consistent shapes:
    #   image_size=16 -> interpolated spatial 8x8; patch 4x4; frames=8, pf=2
    #   num_patches = 2*2*4 = 16, patch_dim = 3*4*4*2 = 96, dim = 32
    image_size, image_patch_size = 16, 4
    frames, frame_patch_size = 8, 2
    dim, channels = 32, 3
    batch = 2

    module = AdditionalVideoTokensPallas(image_size, image_patch_size, frames,
                                         frame_patch_size, dim,
                                         channels=channels, key=k_params)

    video = jax.random.normal(k_vid, (batch, channels, frames, image_size,
                                      image_size), jnp.float32)

    fwd = jax.jit(module.__call__)
    out = fwd(video)
    jax.block_until_ready(out)
    assert out.shape == (batch, 16, dim), out.shape

    ref = reference_forward(module, video)
    max_diff = float(jnp.max(jnp.abs(out - ref)))
    assert max_diff < 1e-2, f"max |pallas - ref| = {max_diff}"

    print("KERNEL_OK")
</pallas_src>

<mosaic_0001>
module attributes {stable_mosaic.version = 11 : i64} {
  func.func @_probe_kernel(%arg0: i32, %arg1: memref<8x128xf32, #tpu.memory_space<vmem>>, %arg2: memref<8x128xf32, #tpu.memory_space<vmem>>) attributes {dimension_semantics = [#tpu.dimension_semantics<arbitrary>], iteration_bounds = array<i64: 2>, scalar_prefetch = 0 : i64, scratch_operands = 0 : i64, tpu.core_type = #tpu.core_type<tc>, window_params = [{pipeline_mode = #tpu.pipeline_mode<synchronous>, transform_indices = @transform_0, window_bounds = array<i64: 8, 128>}, {transform_indices = @transform_1, window_bounds = array<i64: 8, 128>}]} {
    %c0 = arith.constant 0 : index
    %c0_0 = arith.constant 0 : index
    %0 = vector.load %arg1[%c0, %c0_0] : memref<8x128xf32, #tpu.memory_space<vmem>>, vector<8x128xf32>
    %cst = arith.constant 1.000000e+00 : f32
    %1 = vector.broadcast %cst : f32 to vector<8x128xf32>
    %2 = arith.addf %0, %1 : vector<8x128xf32>
    %c0_1 = arith.constant 0 : index
    %c0_2 = arith.constant 0 : index
    %3 = vector.load %arg2[%c0_1, %c0_2] : memref<8x128xf32, #tpu.memory_space<vmem>>, vector<8x128xf32>
    tpu.vector_store %arg2[%c0_1, %c0_2], %2 {strides = array<i32>} : memref<8x128xf32, #tpu.memory_space<vmem>>, vector<8x128xf32>,
    return
  }
  func.func @transform_0(%arg0: i32) -> (i32, i32) {
    %c0_i32 = arith.constant 0 : i32
    %c0_i32_0 = arith.constant 0 : i32
    %c0_i32_1 = arith.constant 0 : i32
    return %c0_i32, %c0_i32_0 : i32, i32
  }
  func.func @transform_1(%arg0: i32) -> (i32, i32) {
    %c0_i32 = arith.constant 0 : i32
    %c0_i32_0 = arith.constant 0 : i32
    return %arg0, %c0_i32 : i32, i32
  }
}

module attributes {stable_mosaic.version = 11 : i64} {
  func.func @_embed_kernel(%arg0: i32, %arg1: i32, %arg2: memref<1x16x96xbf16, #tpu.memory_space<vmem>>, %arg3: memref<1x96xf32, #tpu.memory_space<vmem>>, %arg4: memref<1x96xf32, #tpu.memory_space<vmem>>, %arg5: memref<96x32xbf16, #tpu.memory_space<vmem>>, %arg6: memref<1x32xf32, #tpu.memory_space<vmem>>, %arg7: memref<1x32xf32, #tpu.memory_space<vmem>>, %arg8: memref<1x32xf32, #tpu.memory_space<vmem>>, %arg9: memref<16x32xf32, #tpu.memory_space<vmem>>, %arg10: memref<1x16x32xf32, #tpu.memory_space<vmem>>) attributes {dimension_semantics = [#tpu.dimension_semantics<parallel>, #tpu.dimension_semantics<parallel>], iteration_bounds = array<i64: 1, 2>, scalar_prefetch = 0 : i64, scratch_operands = 0 : i64, tpu.core_type = #tpu.core_type<tc>, window_params = [{transform_indices = @transform_0, window_bounds = array<i64: 1, 16, 96>}, {pipeline_mode = #tpu.pipeline_mode<synchronous>, transform_indices = @transform_1, window_bounds = array<i64: 1, 96>}, {pipeline_mode = #tpu.pipeline_mode<synchronous>, transform_indices = @transform_2, window_bounds = array<i64: 1, 96>}, {pipeline_mode = #tpu.pipeline_mode<synchronous>, transform_indices = @transform_3, window_bounds = array<i64: 96, 32>}, {pipeline_mode = #tpu.pipeline_mode<synchronous>, transform_indices = @transform_4, window_bounds = array<i64: 1, 32>}, {pipeline_mode = #tpu.pipeline_mode<synchronous>, transform_indices = @transform_5, window_bounds = array<i64: 1, 32>}, {pipeline_mode = #tpu.pipeline_mode<synchronous>, transform_indices = @transform_6, window_bounds = array<i64: 1, 32>}, {transform_indices = @transform_7, window_bounds = array<i64: 16, 32>}, {transform_indices = @transform_8, window_bounds = array<i64: 1, 16, 32>}]} {
    %c0 = arith.constant 0 : index
    %c0_0 = arith.constant 0 : index
    %c0_1 = arith.constant 0 : index
    %0 = vector.load %arg2[%c0, %c0_0, %c0_1] : memref<1x16x96xbf16, #tpu.memory_space<vmem>>, vector<1x16x96xbf16>
    %1 = vector.shape_cast %0 : vector<1x16x96xbf16> to vector<16x96xbf16>
    %2 = arith.extf %1 : vector<16x96xbf16> to vector<16x96xf32>
    %cst = arith.constant dense<0.000000e+00> : vector<16xf32>
    %3 = vector.multi_reduction <add>, %2, %cst [1] : vector<16x96xf32> to vector<16xf32>
    %4 = vector.shape_cast %3 : vector<16xf32> to vector<16x1xf32>
    %cst_2 = arith.constant 9.600000e+01 : f32
    %5 = vector.broadcast %cst_2 : f32 to vector<16x1xf32>
    %6 = arith.divf %4, %5 : vector<16x1xf32>
    %7 = vector.broadcast %6 : vector<16x1xf32> to vector<16x96xf32>
    %8 = arith.subf %2, %7 : vector<16x96xf32>
    %9 = arith.mulf %8, %8 : vector<16x96xf32>
    %cst_3 = arith.constant dense<0.000000e+00> : vector<16xf32>
    %10 = vector.multi_reduction <add>, %9, %cst_3 [1] : vector<16x96xf32> to vector<16xf32>
    %11 = vector.shape_cast %10 : vector<16xf32> to vector<16x1xf32>
    %cst_4 = arith.constant 9.600000e+01 : f32
    %12 = vector.broadcast %cst_4 : f32 to vector<16x1xf32>
    %13 = arith.divf %11, %12 : vector<16x1xf32>
    %cst_5 = arith.constant 9.99999974E-6 : f32
    %14 = vector.broadcast %cst_5 : f32 to vector<16x1xf32>
    %15 = arith.addf %13, %14 : vector<16x1xf32>
    %16 = math.rsqrt %15 : vector<16x1xf32>
    %17 = vector.broadcast %16 : vector<16x1xf32> to vector<16x96xf32>
    %18 = arith.mulf %8, %17 : vector<16x96xf32>
    %c0_6 = arith.constant 0 : index
    %c0_7 = arith.constant 0 : index
    %19 = vector.load %arg3[%c0_6, %c0_7] : memref<1x96xf32, #tpu.memory_space<vmem>>, vector<1x96xf32>
    %20 = vector.broadcast %19 : vector<1x96xf32> to vector<16x96xf32>
    %21 = arith.mulf %18, %20 : vector<16x96xf32>
    %c0_8 = arith.constant 0 : index
    %c0_9 = arith.constant 0 : index
    %22 = vector.load %arg4[%c0_8, %c0_9] : memref<1x96xf32, #tpu.memory_space<vmem>>, vector<1x96xf32>
    %23 = vector.broadcast %22 : vector<1x96xf32> to vector<16x96xf32>
    %24 = arith.addf %21, %23 : vector<16x96xf32>
    %25 = arith.truncf %24 : vector<16x96xf32> to vector<16x96xbf16>
    %c0_10 = arith.constant 0 : index
    %c0_11 = arith.constant 0 : index
    %26 = vector.load %arg5[%c0_10, %c0_11] : memref<96x32xbf16, #tpu.memory_space<vmem>>, vector<96x32xbf16>
    %cst_12 = arith.constant dense<0.000000e+00> : vector<16x32xf32>
    %27 = tpu.matmul %25, %26, %cst_12 {dimension_numbers = #tpu.dot_dimension_numbers<[1], [0], [0], [1], [0, 0, 1, 1], [], []>} : vector<16x96xbf16>, vector<96x32xbf16>, vector<16x32xf32> -> vector<16x32xf32>
    %c0_13 = arith.constant 0 : index
    %c0_14 = arith.constant 0 : index
    %28 = vector.load %arg6[%c0_13, %c0_14] : memref<1x32xf32, #tpu.memory_space<vmem>>, vector<1x32xf32>
    %29 = vector.broadcast %28 : vector<1x32xf32> to vector<16x32xf32>
    %30 = arith.addf %27, %29 : vector<16x32xf32>
    %cst_15 = arith.constant dense<0.000000e+00> : vector<16xf32>
    %31 = vector.multi_reduction <add>, %30, %cst_15 [1] : vector<16x32xf32> to vector<16xf32>
    %32 = vector.shape_cast %31 : vector<16xf32> to vector<16x1xf32>
    %cst_16 = arith.constant 3.125000e-02 : f32
    %33 = vector.broadcast %cst_16 : f32 to vector<16x1xf32>
    %34 = arith.mulf %32, %33 : vector<16x1xf32>
    %35 = arith.mulf %30, %30 : vector<16x32xf32>
    %cst_17 = arith.constant dense<0.000000e+00> : vector<16xf32>
    %36 = vector.multi_reduction <add>, %35, %cst_17 [1] : vector<16x32xf32> to vector<16xf32>
    %37 = vector.shape_cast %36 : vector<16xf32> to vector<16x1xf32>
    %cst_18 = arith.constant 3.125000e-02 : f32
    %38 = vector.broadcast %cst_18 : f32 to vector<16x1xf32>
    %39 = arith.mulf %37, %38 : vector<16x1xf32>
    %40 = arith.mulf %34, %34 : vector<16x1xf32>
    %41 = arith.subf %39, %40 : vector<16x1xf32>
    %cst_19 = arith.constant 0.000000e+00 : f32
    %42 = vector.broadcast %cst_19 : f32 to vector<16x1xf32>
    %43 = arith.maximumf %41, %42 : vector<16x1xf32>
    %44 = vector.broadcast %34 : vector<16x1xf32> to vector<16x32xf32>
    %45 = arith.subf %30, %44 : vector<16x32xf32>
    %cst_20 = arith.constant 9.99999974E-6 : f32
    %46 = vector.broadcast %cst_20 : f32 to vector<16x1xf32>
    %47 = arith.addf %43, %46 : vector<16x1xf32>
    %48 = math.rsqrt %47 : vector<16x1xf32>
    %49 = vector.broadcast %48 : vector<16x1xf32> to vector<16x32xf32>
    %50 = arith.mulf %45, %49 : vector<16x32xf32>
    %c0_21 = arith.constant 0 : index
    %c0_22 = arith.constant 0 : index
    %51 = vector.load %arg7[%c0_21, %c0_22] : memref<1x32xf32, #tpu.memory_space<vmem>>, vector<1x32xf32>
    %52 = vector.broadcast %51 : vector<1x32xf32> to vector<16x32xf32>
    %53 = arith.mulf %50, %52 : vector<16x32xf32>
    %c0_23 = arith.constant 0 : index
    %c0_24 = arith.constant 0 : index
    %54 = vector.load %arg8[%c0_23, %c0_24] : memref<1x32xf32, #tpu.memory_space<vmem>>, vector<1x32xf32>
    %55 = vector.broadcast %54 : vector<1x32xf32> to vector<16x32xf32>
    %56 = arith.addf %53, %55 : vector<16x32xf32>
    %c0_25 = arith.constant 0 : index
    %c0_26 = arith.constant 0 : index
    %57 = vector.load %arg9[%c0_25, %c0_26] : memref<16x32xf32, #tpu.memory_space<vmem>>, vector<16x32xf32>
    %58 = arith.addf %56, %57 : vector<16x32xf32>
    %c0_27 = arith.constant 0 : index
    %c0_28 = arith.constant 0 : index
    %c0_29 = arith.constant 0 : index
    %59 = vector.load %arg10[%c0_27, %c0_28, %c0_29] : memref<1x16x32xf32, #tpu.memory_space<vmem>>, vector<1x16x32xf32>
    %60 = vector.shape_cast %59 : vector<1x16x32xf32> to vector<16x32xf32>
    %61 = vector.shape_cast %58 : vector<16x32xf32> to vector<1x16x32xf32>
    tpu.vector_store %arg10[%c0_27, %c0_28, %c0_29], %61 {strides = array<i32>} : memref<1x16x32xf32, #tpu.memory_space<vmem>>, vector<1x16x32xf32>,
    return
  }
  func.func @transform_0(%arg0: i32, %arg1: i32) -> (i32, i32, i32) {
    %c0_i32 = arith.constant 0 : i32
    %c0_i32_0 = arith.constant 0 : i32
    return %arg1, %arg0, %c0_i32 : i32, i32, i32
  }
  func.func @transform_1(%arg0: i32, %arg1: i32) -> (i32, i32) {
    %c0_i32 = arith.constant 0 : i32
    %c0_i32_0 = arith.constant 0 : i32
    %c0_i32_1 = arith.constant 0 : i32
    return %c0_i32, %c0_i32_0 : i32, i32
  }
  func.func @transform_2(%arg0: i32, %arg1: i32) -> (i32, i32) {
    %c0_i32 = arith.constant 0 : i32
    %c0_i32_0 = arith.constant 0 : i32
    %c0_i32_1 = arith.constant 0 : i32
    return %c0_i32, %c0_i32_0 : i32, i32
  }
  func.func @transform_3(%arg0: i32, %arg1: i32) -> (i32, i32) {
    %c0_i32 = arith.constant 0 : i32
    %c0_i32_0 = arith.constant 0 : i32
    %c0_i32_1 = arith.constant 0 : i32
    return %c0_i32, %c0_i32_0 : i32, i32
  }
  func.func @transform_4(%arg0: i32, %arg1: i32) -> (i32, i32) {
    %c0_i32 = arith.constant 0 : i32
    %c0_i32_0 = arith.constant 0 : i32
    %c0_i32_1 = arith.constant 0 : i32
    return %c0_i32, %c0_i32_0 : i32, i32
  }
  func.func @transform_5(%arg0: i32, %arg1: i32) -> (i32, i32) {
    %c0_i32 = arith.constant 0 : i32
    %c0_i32_0 = arith.constant 0 : i32
    %c0_i32_1 = arith.constant 0 : i32
    return %c0_i32, %c0_i32_0 : i32, i32
  }
  func.func @transform_6(%arg0: i32, %arg1: i32) -> (i32, i32) {
    %c0_i32 = arith.constant 0 : i32
    %c0_i32_0 = arith.constant 0 : i32
    %c0_i32_1 = arith.constant 0 : i32
    return %c0_i32, %c0_i32_0 : i32, i32
  }
  func.func @transform_7(%arg0: i32, %arg1: i32) -> (i32, i32) {
    %c0_i32 = arith.constant 0 : i32
    %c0_i32_0 = arith.constant 0 : i32
    return %arg0, %c0_i32 : i32, i32
  }
  func.func @transform_8(%arg0: i32, %arg1: i32) -> (i32, i32, i32) {
    %c0_i32 = arith.constant 0 : i32
    %c0_i32_0 = arith.constant 0 : i32
    return %arg1, %arg0, %c0_i32 : i32, i32, i32
  }
}

</mosaic_0001>

<llo_original>
// kernel: tpu_custom_call.1
$region0: #{tpu_custom_call.1}
  #allocation0 [shape = 'u32[]', space=smem, size = 0x4, offset = 0x4, fixed_abs, tag = 'smem constant byte address 0x4 - core index']
  #allocation1 [shape = 'u32[144,128]{1,0:T(1,128)}', space=vmem, size = 0x12000, scoped, tag = 'internal scratch']
  %s0 = inlined_call_operand.hbm [shape: f32[8,128], index: 0, kind: input, shape index: {}]
  %s1 = inlined_call_operand.hbm [shape: f32[16,128], index: 1, kind: output, shape index: {}]
  %s2 = sld [smem:[#allocation0]]
  $region41: #{tpu_custom_call.1} parent=0
    _
  %s4 = ssub.s32 1, %s2
  %s5 = scalar_select 0, %s4, %s2
  $region1: #{tpu_custom_call.1} parent=0
    #allocation2 [shape = 'u8[4096]{0}', space=vmem, size = 0x1000, scoped, tag = 'input window, operand 0, single buffered']
    #allocation3 [shape = 's32[2]{0}', space=sflag, size = 0x8, scoped, tag = 'scoped memory for tpu_custom_call.1']
    #allocation4 [shape = 's32[2]{0}', space=sflag, size = 0x8, scoped, tag = 'scoped memory for tpu_custom_call.1']
    #allocation5 [shape = 'u8[8192]{0}', space=vmem, size = 0x2000, scoped, tag = 'output window, operand 0']
    %6 = vsyncpa [#allocation3], 0
    %7 = vsyncpa [#allocation4], 0
    %s8 = scalar_lea.sflag [#allocation4], 1
    %9 = vsyncpa %s8, 0
    loop: start=0, step=1, limit=4
    $region2: #{tpu_custom_call.1} parent=1 // loop_pre_header
      _
    $region3: #{tpu_custom_call.1} parent=1 // loop_header
      %s11 = sphi 0, %s15
      %p12 = scmp.ge.s32.totalorder %s11, 4
      %s19 = sphi 0, %s19
      %s21 = sphi 0, %s19
      %s22 = sphi 0, %s21
      %s36 = sphi 0, %s22
      %s42 = sphi 0, %s44
      %s45 = sphi 0, %s42
      %s46 = sphi 0, %s45
      %s62 = sphi 0, %s46
    $region4: #{tpu_custom_call.1} parent=1 // loop_header_branch
      %14 = sbr.rel (%p12) target = $region8
    $region5: #{tpu_custom_call.1} parent=1 // loop_body
      %s16 = ssub.s32 %s11, 1
      %s17 = ssub.s32 %s11, 2
      %s18 = sadd.s32 %s11, 1
      %s20 = sadd.s32 %s19, 1
      %p23 = scmp.eq.s32.totalorder %s11, 1
      %p24 = scmp.ne.s32.totalorder %s19, %s21
      %p25 = scmp.eq.s32.totalorder %s11, 0
      %p26 = por %p24, %p25
      %p27 = scmp.ne.s32.totalorder %s19, %s21
      %p28 = scmp.eq.s32.totalorder %s16, 1
      %p29 = por %p27, %p28
      %p30 = scmp.ne.s32.totalorder %s21, %s22
      %p31 = scmp.eq.s32.totalorder %s16, 0
      %p32 = por %p30, %p31
      %p33 = scmp.ne.s32.totalorder %s21, %s22
      %p34 = scmp.eq.s32.totalorder %s17, 1
      %p35 = por %p33, %p34
      %p37 = scmp.ne.s32.totalorder %s22, %s36
      %p38 = scmp.eq.s32.totalorder %s17, 0
      %p39 = por %p37, %p38
      %s40 = ssub.s32 %s11, %s18
      %p41 = scmp.eq.s32.totalorder %s40, 0
      %s43 = sadd.s32 %s42, 1
      %s44 = scalar_select %p41, %s42, %s43
      %p47 = pneg %p41
      %p48 = scmp.eq.s32.totalorder %s11, 1
      %p49 = por %p47, %p48
      %p50 = scmp.ne.s32.totalorder %s42, %s45
      %p51 = scmp.eq.s32.totalorder %s11, 0
      %p52 = por %p50, %p51
      %p53 = scmp.ne.s32.totalorder %s42, %s45
      %p54 = scmp.eq.s32.totalorder %s16, 1
      %p55 = por %p53, %p54
      %p56 = scmp.ne.s32.totalorder %s45, %s46
      %p57 = scmp.eq.s32.totalorder %s16, 0
      %p58 = por %p56, %p57
      %p59 = scmp.ne.s32.totalorder %s45, %s46
      %p60 = scmp.eq.s32.totalorder %s17, 1
      %p61 = por %p59, %p60
      %p63 = scmp.ne.s32.totalorder %s46, %s62
      %p64 = scmp.eq.s32.totalorder %s17, 0
      %p65 = por %p63, %p64
      %p66 = scmp.le.s32.totalorder 1, %s11
      %p67 = scmp.lt.s32.totalorder %s11, 3
      %p68 = pnand %p66, %p67
      %p69 = pneg %p68
      // Predicated region
      $region9: #{tpu_custom_call.1} parent=5 // pred_check
        _
      $region10: #{tpu_custom_call.1} parent=5 // pred_check_branch
        %71 = sbr.rel (%p68) target = $region12
      $region11: #{tpu_custom_call.1} parent=5 // pred_region
        %s72 = ssub.s32 %s11, 1
        // Predicated region
        $region13: #{tpu_custom_call.1} parent=11 // pred_check
          %p73 = pneg %p32
        $region14: #{tpu_custom_call.1} parent=11 // pred_check_branch
          %75 = sbr.rel (%p73) target = $region16
        $region15: #{tpu_custom_call.1} parent=11 // pred_region
          %s77 = ssub.s32 128, 128
          %78 = vsyncadd [#allocation3], %s77
          %s80 = sshll.u32 [#allocation2], 4
          %s81 = int_to_ptr.vmem [resolvable:$true] %s80
          %83 = dma.hbm_to_vmem [thread:$0]  %s0, 128, %s81, [#allocation3]
        $region16: #{tpu_custom_call.1} parent=11 // pred_fallthru
          _
      $region12: #{tpu_custom_call.1} parent=5 // pred_fallthru
        _
      %p84 = scmp.lt.s32.totalorder %s11, 2
      // Predicated region
      $region17: #{tpu_custom_call.1} parent=5 // pred_check
        %p85 = pneg %p84
      $region18: #{tpu_custom_call.1} parent=5 // pred_check_branch
        %87 = sbr.rel (%p85) target = $region20
      $region19: #{tpu_custom_call.1} parent=5 // pred_region
        _
      $region20: #{tpu_custom_call.1} parent=5 // pred_fallthru
        _
      %p88 = scmp.le.s32.totalorder 1, %s11
      %p89 = scmp.lt.s32.totalorder %s11, 3
      %p90 = pnand %p88, %p89
      %p91 = pneg %p90
      // Predicated region
      $region21: #{tpu_custom_call.1} parent=5 // pred_check
        _
      $region22: #{tpu_custom_call.1} parent=5 // pred_check_branch
        %93 = sbr.rel (%p90) target = $region24
      $region23: #{tpu_custom_call.1} parent=5 // pred_region
        %s94 = ssub.s32 %s11, 1
        // Predicated region
        $region25: #{tpu_custom_call.1} parent=23 // pred_check
          %p95 = pneg %p32
        $region26: #{tpu_custom_call.1} parent=23 // pred_check_branch
          %97 = sbr.rel (%p95) target = $region28
        $region27: #{tpu_custom_call.1} parent=23 // pred_region
          %98 = dma.done [#allocation3], 128
        $region28: #{tpu_custom_call.1} parent=23 // pred_fallthru
          _
        %p99 = pneg %p32
        %p100 = pneg %p29
        %p101 = pneg %p58
        %p102 = pneg %p55
        %s103 = sand.u32 %s45, 1
        %s104 = scalar_lea.sflag [#allocation4], %s103
        %s105 = sand.u32 %s45, 1
        %s106 = smul.addr %s105, 8
        %s107 = scalar_lea.vmem [#allocation5], %s106
        %v108 = vld [vmem:[#allocation2] sm:$0xff]
        %v109 = vadd.f32 %v108, 1.0
        %110 = vst [vmem:[%s107] sm:$0xff] %v109
        %s111 = sand.u32 %s45, 1
        %s112 = scalar_lea.sflag [#allocation4], %s111
        %s113 = sand.u32 %s45, 1
        %s114 = smul.addr %s113, 8
        %s115 = scalar_lea.vmem [#allocation5], %s114
        // Predicated region
        $region29: #{tpu_custom_call.1} parent=23 // pred_check
          %p116 = pneg %p55
        $region30: #{tpu_custom_call.1} parent=23 // pred_check_branch
          %118 = sbr.rel (%p116) target = $region32
        $region31: #{tpu_custom_call.1} parent=23 // pred_region
          %s120 = ssub.s32 128, 128
          %121 = vsyncadd %s112, %s120
          %s122 = smul.addr %s16, 128
          %s123 = scalar_lea.hbm %s1, %s122
          %s125 = sshll.u32 %s115, 4
          %s126 = int_to_ptr.vmem [resolvable:$true] %s125
          %128 = dma.vmem_to_hbm [thread:$0]  %s126, 128, %s123, %s112
        $region32: #{tpu_custom_call.1} parent=23 // pred_fallthru
          _
      $region24: #{tpu_custom_call.1} parent=5 // pred_fallthru
        _
      %p129 = scmp.le.s32.totalorder 2, %s11
      // Predicated region
      $region33: #{tpu_custom_call.1} parent=5 // pred_check
        %p130 = pneg %p129
      $region34: #{tpu_custom_call.1} parent=5 // pred_check_branch
        %132 = sbr.rel (%p130) target = $region36
      $region35: #{tpu_custom_call.1} parent=5 // pred_region
        %s133 = ssub.s32 %s11, 2
        // Predicated region
        $region37: #{tpu_custom_call.1} parent=35 // pred_check
          %p134 = pneg %p61
        $region38: #{tpu_custom_call.1} parent=35 // pred_check_branch
          %136 = sbr.rel (%p134) target = $region40
        $region39: #{tpu_custom_call.1} parent=35 // pred_region
          %s137 = sand.u32 %s46, 1
          %s138 = scalar_lea.sflag [#allocation4], %s137
          %s139 = sand.u32 %s46, 1
          %s140 = smul.addr %s139, 8
          %s141 = scalar_lea.vmem [#allocation5], %s140
          %142 = dma.done %s138, 128
        $region40: #{tpu_custom_call.1} parent=35 // pred_fallthru
          _
      $region36: #{tpu_custom_call.1} parent=5 // pred_fallthru
        _
    $region6: #{tpu_custom_call.1} parent=1 // loop_footer
      %s15 = sadd.s32 1, %s11
    $region7: #{tpu_custom_call.1} parent=1 // loop_footer_branch
      %10 = sbr.rel target = $region3
    $region8: #{tpu_custom_call.1} parent=1 // loop_exit
      _
    %143 = vsyncpa [#allocation3], 1
    %s144 = scalar_lea.sflag [#allocation3], 1
    %145 = vsyncpa %s144, 1
    %146 = vsyncpa [#allocation4], 1
    %s147 = scalar_lea.sflag [#allocation4], 1
    %148 = vsyncpa %s147, 1

// kernel: a_call__.1
$region0: #{a_call__.1}
  #allocation0 [shape = 'u32[]', space=smem, size = 0x4, offset = 0x4, fixed_abs, tag = 'smem constant byte address 0x4 - core index']
  #allocation1 [shape = 'u32[144,128]{1,0:T(1,128)}', space=vmem, size = 0x12000, scoped, tag = 'internal scratch']
  %s0 = inlined_call_operand.vmem [shape: bf16[2,16,96], index: 0, kind: input, shape index: {}]
  %s1 = inlined_call_operand.vmem [shape: f32[1,96], index: 1, kind: input, shape index: {}]
  %s2 = inlined_call_operand.vmem [shape: f32[1,96], index: 2, kind: input, shape index: {}]
  %s3 = inlined_call_operand.vmem [shape: bf16[96,32], index: 3, kind: input, shape index: {}]
  %s4 = inlined_call_operand.vmem [shape: f32[1,32], index: 4, kind: input, shape index: {}]
  %s5 = inlined_call_operand.vmem [shape: f32[1,32], index: 5, kind: input, shape index: {}]
  %s6 = inlined_call_operand.vmem [shape: f32[1,32], index: 6, kind: input, shape index: {}]
  %s7 = inlined_call_operand.vmem [shape: f32[16,32], index: 7, kind: input, shape index: {}]
  %s8 = inlined_call_operand.hbm [shape: f32[2,16,32], index: 8, kind: output, shape index: {}]
  %s9 = sld [smem:[#allocation0]]
  $region65: #{a_call__.1} parent=0
    _
  %s11 = ssub.s32 1, %s9
  %s12 = scalar_select 0, %s11, %s9
  $region1: #{a_call__.1} parent=0
    #allocation2 [shape = 'u8[16384]{0}', space=vmem, size = 0x4000, scoped, tag = 'output window, operand 0']
    #allocation3 [shape = 's32[2]{0}', space=sflag, size = 0x8, scoped, tag = 'scoped memory for a_call__.1']
    %13 = vsyncpa [#allocation3], 0
    %s14 = scalar_lea.sflag [#allocation3], 1
    %15 = vsyncpa %s14, 0
    loop: start=0, step=1, limit=4
    $region2: #{a_call__.1} parent=1 // loop_pre_header
      _
    $region3: #{a_call__.1} parent=1 // loop_header
      %s17 = sphi 0, %s21
      %p18 = scmp.ge.s32.totalorder %s17, 4
      %s24 = sphi 0, %s36
      %s25 = sphi 0, %s32
      %s26 = sphi 0, %s24
      %s27 = sphi 0, %s25
      %s28 = sphi 0, %s26
      %s29 = sphi 0, %s27
      %s41 = sphi 0, %s43
      %s44 = sphi 0, %s41
      %s45 = sphi 0, %s44
      %s61 = sphi 0, %s45
      %s65 = sphi 0, %s65
      %s67 = sphi 0, %s65
      %s68 = sphi 0, %s67
      %s82 = sphi 0, %s68
      %s86 = sphi 0, %s86
      %s88 = sphi 0, %s86
      %s89 = sphi 0, %s88
      %s103 = sphi 0, %s89
      %s107 = sphi 0, %s107
      %s109 = sphi 0, %s107
      %s110 = sphi 0, %s109
      %s124 = sphi 0, %s110
      %s128 = sphi 0, %s128
      %s130 = sphi 0, %s128
      %s131 = sphi 0, %s130
      %s145 = sphi 0, %s131
      %s149 = sphi 0, %s149
      %s151 = sphi 0, %s149
      %s152 = sphi 0, %s151
      %s166 = sphi 0, %s152
      %s170 = sphi 0, %s170
      %s172 = sphi 0, %s170
      %s173 = sphi 0, %s172
      %s187 = sphi 0, %s173
      %s193 = sphi 0, %s195
      %s196 = sphi 0, %s193
      %s197 = sphi 0, %s196
      %s213 = sphi 0, %s197
      %s221 = sphi 0, %s223
      %s224 = sphi 0, %s221
      %s225 = sphi 0, %s224
      %s241 = sphi 0, %s225
    $region4: #{a_call__.1} parent=1 // loop_header_branch
      %20 = sbr.rel (%p18) target = $region8
    $region5: #{a_call__.1} parent=1 // loop_body
      %s22 = ssub.s32 %s17, 1
      %s23 = ssub.s32 %s17, 2
      %s30 = sadd.s32 1, %s25
      %p31 = scmp.ge.s32.totalorder %s30, 2
      %s32 = scalar_select %p31, 0, %s30
      %s33 = sadd.s32 1, %s24
      %s34 = scalar_select %p31, %s33, %s24
      %p35 = scmp.ge.s32.totalorder %s34, 1
      %s36 = scalar_select %p35, 0, %s34
      %s37 = ssub.s32 %s25, %s32
      %s38 = ssub.s32 %s24, %s36
      %s39 = sor.u32 %s37, %s38
      %p40 = scmp.eq.s32.totalorder %s39, 0
      %s42 = sadd.s32 %s41, 1
      %s43 = scalar_select %p40, %s41, %s42
      %p46 = pneg %p40
      %p47 = scmp.eq.s32.totalorder %s17, 1
      %p48 = por %p46, %p47
      %p49 = scmp.ne.s32.totalorder %s41, %s44
      %p50 = scmp.eq.s32.totalorder %s17, 0
      %p51 = por %p49, %p50
      %p52 = scmp.ne.s32.totalorder %s41, %s44
      %p53 = scmp.eq.s32.totalorder %s22, 1
      %p54 = por %p52, %p53
      %p55 = scmp.ne.s32.totalorder %s44, %s45
      %p56 = scmp.eq.s32.totalorder %s22, 0
      %p57 = por %p55, %p56
      %p58 = scmp.ne.s32.totalorder %s44, %s45
      %p59 = scmp.eq.s32.totalorder %s23, 1
      %p60 = por %p58, %p59
      %p62 = scmp.ne.s32.totalorder %s45, %s61
      %p63 = scmp.eq.s32.totalorder %s23, 0
      %p64 = por %p62, %p63
      %s66 = sadd.s32 %s65, 1
      %p69 = scmp.eq.s32.totalorder %s17, 1
      %p70 = scmp.ne.s32.totalorder %s65, %s67
      %p71 = scmp.eq.s32.totalorder %s17, 0
      %p72 = por %p70, %p71
      %p73 = scmp.ne.s32.totalorder %s65, %s67
      %p74 = scmp.eq.s32.totalorder %s22, 1
      %p75 = por %p73, %p74
      %p76 = scmp.ne.s32.totalorder %s67, %s68
      %p77 = scmp.eq.s32.totalorder %s22, 0
      %p78 = por %p76, %p77
      %p79 = scmp.ne.s32.totalorder %s67, %s68
      %p80 = scmp.eq.s32.totalorder %s23, 1
      %p81 = por %p79, %p80
      %p83 = scmp.ne.s32.totalorder %s68, %s82
      %p84 = scmp.eq.s32.totalorder %s23, 0
      %p85 = por %p83, %p84
      %s87 = sadd.s32 %s86, 1
      %p90 = scmp.eq.s32.totalorder %s17, 1
      %p91 = scmp.ne.s32.totalorder %s86, %s88
      %p92 = scmp.eq.s32.totalorder %s17, 0
      %p93 = por %p91, %p92
      %p94 = scmp.ne.s32.totalorder %s86, %s88
      %p95 = scmp.eq.s32.totalorder %s22, 1
      %p96 = por %p94, %p95
      %p97 = scmp.ne.s32.totalorder %s88, %s89
      %p98 = scmp.eq.s32.totalorder %s22, 0
      %p99 = por %p97, %p98
      %p100 = scmp.ne.s32.totalorder %s88, %s89
      %p101 = scmp.eq.s32.totalorder %s23, 1
      %p102 = por %p100, %p101
      %p104 = scmp.ne.s32.totalorder %s89, %s103
      %p105 = scmp.eq.s32.totalorder %s23, 0
      %p106 = por %p104, %p105
      %s108 = sadd.s32 %s107, 1
      %p111 = scmp.eq.s32.totalorder %s17, 1
      %p112 = scmp.ne.s32.totalorder %s107, %s109
      %p113 = scmp.eq.s32.totalorder %s17, 0
      %p114 = por %p112, %p113
      %p115 = scmp.ne.s32.totalorder %s107, %s109
      %p116 = scmp.eq.s32.totalorder %s22, 1
      %p117 = por %p115, %p116
      %p118 = scmp.ne.s32.totalorder %s109, %s110
      %p119 = scmp.eq.s32.totalorder %s22, 0
      %p120 = por %p118, %p119
      %p121 = scmp.ne.s32.totalorder %s109, %s110
      %p122 = scmp.eq.s32.totalorder %s23, 1
      %p123 = por %p121, %p122
      %p125 = scmp.ne.s32.totalorder %s110, %s124
      %p126 = scmp.eq.s32.totalorder %s23, 0
      %p127 = por %p125, %p126
      %s129 = sadd.s32 %s128, 1
      %p132 = scmp.eq.s32.totalorder %s17, 1
      %p133 = scmp.ne.s32.totalorder %s128, %s130
      %p134 = scmp.eq.s32.totalorder %s17, 0
      %p135 = por %p133, %p134
      %p136 = scmp.ne.s32.totalorder %s128, %s130
      %p137 = scmp.eq.s32.totalorder %s22, 1
      %p138 = por %p136, %p137
      %p139 = scmp.ne.s32.totalorder %s130, %s131
      %p140 = scmp.eq.s32.totalorder %s22, 0
      %p141 = por %p139, %p140
      %p142 = scmp.ne.s32.totalorder %s130, %s131
      %p143 = scmp.eq.s32.totalorder %s23, 1
      %p144 = por %p142, %p143
      %p146 = scmp.ne.s32.totalorder %s131, %s145
      %p147 = scmp.eq.s32.totalorder %s23, 0
      %p148 = por %p146, %p147
      %s150 = sadd.s32 %s149, 1
      %p153 = scmp.eq.s32.totalorder %s17, 1
      %p154 = scmp.ne.s32.totalorder %s149, %s151
      %p155 = scmp.eq.s32.totalorder %s17, 0
      %p156 = por %p154, %p155
      %p157 = scmp.ne.s32.totalorder %s149, %s151
      %p158 = scmp.eq.s32.totalorder %s22, 1
      %p159 = por %p157, %p158
      %p160 = scmp.ne.s32.totalorder %s151, %s152
      %p161 = scmp.eq.s32.totalorder %s22, 0
      %p162 = por %p160, %p161
      %p163 = scmp.ne.s32.totalorder %s151, %s152
      %p164 = scmp.eq.s32.totalorder %s23, 1
      %p165 = por %p163, %p164
      %p167 = scmp.ne.s32.totalorder %s152, %s166
      %p168 = scmp.eq.s32.totalorder %s23, 0
      %p169 = por %p167, %p168
      %s171 = sadd.s32 %s170, 1
      %p174 = scmp.eq.s32.totalorder %s17, 1
      %p175 = scmp.ne.s32.totalorder %s170, %s172
      %p176 = scmp.eq.s32.totalorder %s17, 0
      %p177 = por %p175, %p176
      %p178 = scmp.ne.s32.totalorder %s170, %s172
      %p179 = scmp.eq.s32.totalorder %s22, 1
      %p180 = por %p178, %p179
      %p181 = scmp.ne.s32.totalorder %s172, %s173
      %p182 = scmp.eq.s32.totalorder %s22, 0
      %p183 = por %p181, %p182
      %p184 = scmp.ne.s32.totalorder %s172, %s173
      %p185 = scmp.eq.s32.totalorder %s23, 1
      %p186 = por %p184, %p185
      %p188 = scmp.ne.s32.totalorder %s173, %s187
      %p189 = scmp.eq.s32.totalorder %s23, 0
      %p190 = por %p188, %p189
      %s191 = ssub.s32 %s24, %s36
      %p192 = scmp.eq.s32.totalorder %s191, 0
      %s194 = sadd.s32 %s193, 1
      %s195 = scalar_select %p192, %s193, %s194
      %p198 = pneg %p192
      %p199 = scmp.eq.s32.totalorder %s17, 1
      %p200 = por %p198, %p199
      %p201 = scmp.ne.s32.totalorder %s193, %s196
      %p202 = scmp.eq.s32.totalorder %s17, 0
      %p203 = por %p201, %p202
      %p204 = scmp.ne.s32.totalorder %s193, %s196
      %p205 = scmp.eq.s32.totalorder %s22, 1
      %p206 = por %p204, %p205
      %p207 = scmp.ne.s32.totalorder %s196, %s197
      %p208 = scmp.eq.s32.totalorder %s22, 0
      %p209 = por %p207, %p208
      %p210 = scmp.ne.s32.totalorder %s196, %s197
      %p211 = scmp.eq.s32.totalorder %s23, 1
      %p212 = por %p210, %p211
      %p214 = scmp.ne.s32.totalorder %s197, %s213
      %p215 = scmp.eq.s32.totalorder %s23, 0
      %p216 = por %p214, %p215
      %s217 = ssub.s32 %s25, %s32
      %s218 = ssub.s32 %s24, %s36
      %s219 = sor.u32 %s217, %s218
      %p220 = scmp.eq.s32.totalorder %s219, 0
      %s222 = sadd.s32 %s221, 1
      %s223 = scalar_select %p220, %s221, %s222
      %p226 = pneg %p220
      %p227 = scmp.eq.s32.totalorder %s17, 1
      %p228 = por %p226, %p227
      %p229 = scmp.ne.s32.totalorder %s221, %s224
      %p230 = scmp.eq.s32.totalorder %s17, 0
      %p231 = por %p229, %p230
      %p232 = scmp.ne.s32.totalorder %s221, %s224
      %p233 = scmp.eq.s32.totalorder %s22, 1
      %p234 = por %p232, %p233
      %p235 = scmp.ne.s32.totalorder %s224, %s225
      %p236 = scmp.eq.s32.totalorder %s22, 0
      %p237 = por %p235, %p236
      %p238 = scmp.ne.s32.totalorder %s224, %s225
      %p239 = scmp.eq.s32.totalorder %s23, 1
      %p240 = por %p238, %p239
      %p242 = scmp.ne.s32.totalorder %s225, %s241
      %p243 = scmp.eq.s32.totalorder %s23, 0
      %p244 = por %p242, %p243
      %p245 = scmp.le.s32.totalorder 1, %s17
      %p246 = scmp.lt.s32.totalorder %s17, 3
      %p247 = pnand %p245, %p246
      %p248 = pneg %p247
      // Predicated region
      $region9: #{a_call__.1} parent=5 // pred_check
        _
      $region10: #{a_call__.1} parent=5 // pred_check_branch
        %250 = sbr.rel (%p247) target = $region12
      $region11: #{a_call__.1} parent=5 // pred_region
        %s251 = ssub.s32 %s17, 1
        // Predicated region
        $region13: #{a_call__.1} parent=11 // pred_check
          %p252 = pneg %p78
        $region14: #{a_call__.1} parent=11 // pred_check_branch
          %254 = sbr.rel (%p252) target = $region16
        $region15: #{a_call__.1} parent=11 // pred_region
          _
        $region16: #{a_call__.1} parent=11 // pred_fallthru
          _
        // Predicated region
        $region17: #{a_call__.1} parent=11 // pred_check
          %p255 = pneg %p99
        $region18: #{a_call__.1} parent=11 // pred_check_branch
          %257 = sbr.rel (%p255) target = $region20
        $region19: #{a_call__.1} parent=11 // pred_region
          _
        $region20: #{a_call__.1} parent=11 // pred_fallthru
          _
        // Predicated region
        $region21: #{a_call__.1} parent=11 // pred_check
          %p258 = pneg %p120
        $region22: #{a_call__.1} parent=11 // pred_check_branch
          %260 = sbr.rel (%p258) target = $region24
        $region23: #{a_call__.1} parent=11 // pred_region
          _
        $region24: #{a_call__.1} parent=11 // pred_fallthru
          _
        // Predicated region
        $region25: #{a_call__.1} parent=11 // pred_check
          %p261 = pneg %p141
        $region26: #{a_call__.1} parent=11 // pred_check_branch
          %263 = sbr.rel (%p261) target = $region28
        $region27: #{a_call__.1} parent=11 // pred_region
          _
        $region28: #{a_call__.1} parent=11 // pred_fallthru
          _
        // Predicated region
        $region29: #{a_call__.1} parent=11 // pred_check
          %p264 = pneg %p162
        $region30: #{a_call__.1} parent=11 // pred_check_branch
          %266 = sbr.rel (%p264) target = $region32
        $region31: #{a_call__.1} parent=11 // pred_region
          _
        $region32: #{a_call__.1} parent=11 // pred_fallthru
          _
        // Predicated region
        $region33: #{a_call__.1} parent=11 // pred_check
          %p267 = pneg %p183
        $region34: #{a_call__.1} parent=11 // pred_check_branch
          %269 = sbr.rel (%p267) target = $region36
        $region35: #{a_call__.1} parent=11 // pred_region
          _
        $region36: #{a_call__.1} parent=11 // pred_fallthru
          _
        // Predicated region
        $region37: #{a_call__.1} parent=11 // pred_check
          %p270 = pneg %p209
        $region38: #{a_call__.1} parent=11 // pred_check_branch
          %272 = sbr.rel (%p270) target = $region40
        $region39: #{a_call__.1} parent=11 // pred_region
          %s273 = smul.u32 2, %s26
          %p274 = scmp.lt.s32.totalorder %s273, 1
          %s275 = scalar_select %p274, %s273, 1
          %s276 = smul.addr %s275, 8
          %s277 = scalar_lea.vmem %s7, %s276
          %s278 = smul.u32 2, %s26
        $region40: #{a_call__.1} parent=11 // pred_fallthru
          _
      $region12: #{a_call__.1} parent=5 // pred_fallthru
        _
      %p279 = scmp.lt.s32.totalorder %s17, 2
      // Predicated region
      $region41: #{a_call__.1} parent=5 // pred_check
        %p280 = pneg %p279
      $region42: #{a_call__.1} parent=5 // pred_check_branch
        %282 = sbr.rel (%p280) target = $region44
      $region43: #{a_call__.1} parent=5 // pred_region
        // Predicated region
        $region45: #{a_call__.1} parent=43 // pred_check
          %p283 = pneg %p51
        $region46: #{a_call__.1} parent=43 // pred_check_branch
          %285 = sbr.rel (%p283) target = $region48
        $region47: #{a_call__.1} parent=43 // pred_region
          %s286 = smul.u32 2, %s24
          %p287 = scmp.lt.s32.totalorder %s25, 1
          %s288 = scalar_select %p287, %s25, 1
          %p289 = scmp.lt.s32.totalorder %s286, 1
          %s290 = scalar_select %p289, %s286, 1
          %s291 = smul.addr %s288, 2
          %s292 = sadd.s32 %s290, %s291
          %s293 = smul.addr %s292, 4
          %s294 = scalar_lea.vmem %s0, %s293
          %s295 = smul.u32 2, %s24
        $region48: #{a_call__.1} parent=43 // pred_fallthru
          _
      $region44: #{a_call__.1} parent=5 // pred_fallthru
        _
      %p296 = scmp.le.s32.totalorder 1, %s17
      %p297 = scmp.lt.s32.totalorder %s17, 3
      %p298 = pnand %p296, %p297
      %p299 = pneg %p298
      // Predicated region
      $region49: #{a_call__.1} parent=5 // pred_check
        _
      $region50: #{a_call__.1} parent=5 // pred_check_branch
        %301 = sbr.rel (%p298) target = $region52
      $region51: #{a_call__.1} parent=5 // pred_region
        %s302 = ssub.s32 %s17, 1
        %s303 = smul.u32 2, %s26
        %p304 = scmp.lt.s32.totalorder %s27, 1
        %s305 = scalar_select %p304, %s27, 1
        %p306 = scmp.lt.s32.totalorder %s303, 1
        %s307 = scalar_select %p306, %s303, 1
        %s308 = smul.addr %s305, 2
        %s309 = sadd.s32 %s307, %s308
        %s310 = smul.addr %s309, 4
        %s311 = scalar_lea.vmem %s0, %s310
        %p312 = pneg %p57
        %p313 = pneg %p54
        %p314 = pneg %p78
        %p315 = pneg %p75
        %p316 = pneg %p99
        %p317 = pneg %p96
        %p318 = pneg %p120
        %p319 = pneg %p117
        %p320 = pneg %p141
        %p321 = pneg %p138
        %p322 = pneg %p162
        %p323 = pneg %p159
        %p324 = pneg %p183
        %p325 = pneg %p180
        %s326 = smul.u32 2, %s26
        %p327 = scmp.lt.s32.totalorder %s326, 1
        %s328 = scalar_select %p327, %s326, 1
        %s329 = smul.addr %s328, 8
        %s330 = scalar_lea.vmem %s7, %s329
        %p331 = pneg %p209
        %p332 = pneg %p206
        %p333 = pneg %p237
        %p334 = pneg %p234
        %s335 = sand.u32 %s224, 1
        %s336 = scalar_lea.sflag [#allocation3], %s335
        %s337 = sand.u32 %s224, 1
        %s338 = smul.addr %s337, 16
        %s339 = scalar_lea.vmem [#allocation2], %s338
        %s340 = smul.u32 2, %s26
        %p341 = scmp.lt.s32.totalorder %s27, 1
        %s342 = scalar_select %p341, %s27, 1
        %p343 = scmp.lt.s32.totalorder %s340, 1
        %s344 = scalar_select %p343, %s340, 1
        %s345 = smul.addr %s342, 2
        %s346 = sadd.s32 %s344, %s345
        %s347 = smul.addr %s346, 4
        %s348 = scalar_lea.vmem %s0, %s347
        %s349 = smul.u32 2, %s26
        %s350 = smul.u32 2, %s26
        %p351 = scmp.lt.s32.totalorder %s350, 1
        %s352 = scalar_select %p351, %s350, 1
        %s353 = smul.addr %s352, 8
        %s354 = scalar_lea.vmem %s7, %s353
        %s355 = smul.u32 2, %s26
        %s356 = smul.u32 2, %s26
        %v358 = vld [vmem:[%s348] sm:$0xf]
        %v359 = vld [vmem:[%s348 + $0x4] sm:$0xf]
        %v360 = vunpack.c.l.bf16 %v358
        %v361 = vunpack.c.l.bf16 %v359
        %vm362 = vcmask 785408
        %v363 = vsel %vm362, %v360, 0.0
        %364 = vadd.xlane.f32.xlu0 %v363
        %v365 = vpop.xlane.xlu0 %364
        %v366 = vsel %vm362, %v361, 0.0
        %367 = vadd.xlane.f32.xlu0 %v366
        %v368 = vpop.xlane.xlu0 %367
        %v369 = vrcp.pop 96.0
        %v370 = vmul.f32 %v365, %v369
        %v371 = vmul.f32 %v368, %v369
        %v372 = vsub.f32 %v360, %v370
        %v373 = vsub.f32 %v361, %v371
        %v374 = vmul.f32 %v372, %v372
        %v375 = vmul.f32 %v373, %v373
        %v376 = vsel %vm362, %v374, 0.0
        %377 = vadd.xlane.f32.xlu0 %v376
        %v378 = vpop.xlane.xlu0 %377
        %v379 = vsel %vm362, %v375, 0.0
        %380 = vadd.xlane.f32.xlu0 %v379
        %v381 = vpop.xlane.xlu0 %380
        %v382 = vmul.f32 %v378, %v369
        %v383 = vmul.f32 %v381, %v369
        %v384 = vadd.f32 %v382, 1e-05
        %v385 = vadd.f32 %v383, 1e-05
        %v386 = vrsqrt.pop %v384
        %v387 = vrsqrt.pop %v385
        %v388 = vmul.f32 %v372, %v386
        %v389 = vmul.f32 %v373, %v387
        %v390 = vld [vmem:[%s1] sm:$0x1]
        %v392 = vlaneseq
        %v393 = vshrl.u32 %v392, 7
        %v394 = vsub.s32 0, %v393
        %v395 = vrot.slane %v390, %v394
        %v397 = vmul.f32 %v388, %v395
        %v398 = vmul.f32 %v389, %v395
        %v399 = vld [vmem:[%s2] sm:$0x1]
        %v401 = vlaneseq
        %v402 = vshrl.u32 %v401, 7
        %v403 = vsub.s32 0, %v402
        %v404 = vrot.slane %v399, %v403
        %v406 = vadd.f32 %v397, %v404
        %v407 = vadd.f32 %v398, %v404
        %v408 = vpack.c.bf16 %v407, %v406
        %v409 = vld [vmem:[%s3] sm:$0xf]
        %v410 = vld [vmem:[%s3 + $0x4] sm:$0xf]
        %v411 = vld [vmem:[%s3 + $0x8] sm:$0xf]
        %v412 = vld [vmem:[%s3 + $0xc] sm:$0xf]
        %v413 = vld [vmem:[%s3 + $0x10] sm:$0xf]
        %v414 = vld [vmem:[%s3 + $0x14] sm:$0xf]
        %v415 = vld [vmem:[%s3 + $0x18] sm:$0xf]
        %v416 = vld [vmem:[%s3 + $0x1c] sm:$0xf]
        %v417 = vld [vmem:[%s3 + $0x20] sm:$0xf]
        %v418 = vld [vmem:[%s3 + $0x24] sm:$0xf]
        %v419 = vld [vmem:[%s3 + $0x28] sm:$0xf]
        %v420 = vld [vmem:[%s3 + $0x2c] sm:$0xf]
        %v421 = vld [vmem:[%s4] sm:$0x1]
        %v423 = vlaneseq
        %v424 = vshrl.u32 %v423, 7
        %v425 = vsub.s32 0, %v424
        %v426 = vrot.slane %v421, %v425
        %v440 = vunpack.c.l.b16 %v409
        %v441 = vunpack.c.l.b16 %v410
        %v442 = vunpack.c.l.b16 %v411
        %v443 = vunpack.c.l.b16 %v412
        %v444 = vunpack.c.l.b16 %v413
        %v445 = vunpack.c.l.b16 %v414
        %v446 = vunpack.c.l.b16 %v415
        %v447 = vunpack.c.l.b16 %v416
        %v448 = vunpack.c.l.b16 %v417
        %v449 = vunpack.c.l.b16 %v418
        %v450 = vunpack.c.l.b16 %v419
        %v451 = vunpack.c.l.b16 %v420
        %v452 = vpack.c.b16 %v441, %v440
        %v453 = vpack.c.b16 %v443, %v442
        %v454 = vpack.c.b16 %v445, %v444
        %v455 = vpack.c.b16 %v447, %v446
        %v456 = vpack.c.b16 %v449, %v448
        %v457 = vpack.c.b16 %v451, %v450
        %v465 = vsel %vm362, %v408, 0
        %467 = vmatprep.subr.bf16.mxu0 0
        %468 = vmatpush1.bf16.msra.mxu0 %v452
        %469 = vmatprep.subr.bf16.mxu0 0
        %470 = vmatpush1.bf16.msra.mxu0 %v453
        %471 = vmatprep.subr.bf16.mxu0 0
        %472 = vmatpush1.bf16.msra.mxu0 %v454
        %473 = vmatprep.subr.bf16.mxu0 0
        %474 = vmatpush1.bf16.msra.mxu0 %v455
        %475 = vmatprep.subr.bf16.mxu0 0
        %476 = vmatpush1.bf16.msra.mxu0 %v456
        %477 = vmatprep.subr.bf16.mxu0 0
        %478 = vmatpush1.bf16.msra.mxu0 %v457
        %479 = vmatprep.subr.bf16.mxu0 0
        %480 = vmatpush1.bf16.msra.mxu0 0
        %481 = vmatprep.subr.bf16.mxu0 0
        %482 = vmatpush1.bf16.msra.mxu0 0
        %483 = vmatprep.subr.bf16.mxu0 0
        %484 = vmatpush1.bf16.msra.mxu0 0
        %485 = vmatprep.subr.bf16.mxu0 0
        %486 = vmatpush1.bf16.msra.mxu0 0
        %487 = vmatprep.subr.bf16.mxu0 0
        %488 = vmatpush1.bf16.msra.mxu0 0
        %489 = vmatprep.subr.bf16.mxu0 0
        %490 = vmatpush1.bf16.msra.mxu0 0
        %491 = vmatprep.subr.bf16.mxu0 0
        %492 = vmatpush1.bf16.msra.mxu0 0
        %493 = vmatprep.subr.bf16.mxu0 0
        %494 = vmatpush1.bf16.msra.mxu0 0
        %495 = vmatprep.subr.bf16.mxu0 0
        %496 = vmatpush1.bf16.msra.mxu0 0
        %497 = vmatprep.subr.bf16.mxu0 0
        %498 = vmatpush1.bf16.msra.mxu0 0
        %499 = vmatprep.mubr.bf16.mxu0 0
        %500 = vmatmul.mubr.bf16.gmra.mrb[0].mxu0 %v465
        %v501 = vpop.f32.mrb[0].mxu0
        %v502 = vadd.f32 %v426, %v501
        %v503 = vpop.f32.mrb[0].mxu0
        %v504 = vpop.f32.mrb[0].mxu0
        %v505 = vadd.f32 %v426, %v504
        %v506 = vpop.f32.mrb[0].mxu0
        %507 = vdwg.mxu0
        %vm508 = vcmask 261120
        %v509 = vsel %vm508, %v502, 0.0
        %510 = vadd.xlane.f32.xlu0 %v509
        %v511 = vpop.xlane.xlu0 %510
        %v512 = vsel %vm508, %v505, 0.0
        %513 = vadd.xlane.f32.xlu0 %v512
        %v514 = vpop.xlane.xlu0 %513
        %v515 = vmul.f32 %v511, 0.03125
        %v516 = vmul.f32 %v514, 0.03125
        %v517 = vmul.f32 %v502, %v502
        %v518 = vmul.f32 %v505, %v505
        %v519 = vsel %vm508, %v517, 0.0
        %520 = vadd.xlane.f32.xlu0 %v519
        %v521 = vpop.xlane.xlu0 %520
        %v522 = vsel %vm508, %v518, 0.0
        %523 = vadd.xlane.f32.xlu0 %v522
        %v524 = vpop.xlane.xlu0 %523
        %v525 = vmul.f32 %v521, 0.03125
        %v526 = vmul.f32 %v524, 0.03125
        %v527 = vmul.f32 %v515, %v515
        %v528 = vmul.f32 %v516, %v516
        %v529 = vsub.f32 %v525, %v527
        %v530 = vsub.f32 %v526, %v528
        %v531 = vmax.f32 %v529, 0.0
        %v532 = vmax.f32 %v530, 0.0
        %v533 = vsub.f32 %v502, %v515
        %v534 = vsub.f32 %v505, %v516
        %v535 = vadd.f32 %v531, 1e-05
        %v536 = vadd.f32 %v532, 1e-05
        %v537 = vrsqrt.pop %v535
        %v538 = vrsqrt.pop %v536
        %v539 = vmul.f32 %v533, %v537
        %v540 = vmul.f32 %v534, %v538
        %v541 = vld [vmem:[%s5] sm:$0x1]
        %v543 = vlaneseq
        %v544 = vshrl.u32 %v543, 7
        %v545 = vsub.s32 0, %v544
        %v546 = vrot.slane %v541, %v545
        %v548 = vmul.f32 %v539, %v546
        %v549 = vmul.f32 %v540, %v546
        %v550 = vld [vmem:[%s6] sm:$0x1]
        %v552 = vlaneseq
        %v553 = vshrl.u32 %v552, 7
        %v554 = vsub.s32 0, %v553
        %v555 = vrot.slane %v550, %v554
        %v557 = vadd.f32 %v548, %v555
        %v558 = vadd.f32 %v549, %v555
        %v559 = vld [vmem:[%s354] sm:$0xff]
        %v560 = vld [vmem:[%s354 + $0x8] sm:$0xff]
        %v561 = vadd.f32 %v557, %v559
        %v562 = vadd.f32 %v558, %v560
        %563 = vst.msk [vmem:[%s339] sm:$0xff] %vm508, %v561
        %564 = vst.msk [vmem:[%s339 + $0x8] sm:$0xff] %vm508, %v562
        %s565 = sand.u32 %s224, 1
        %s566 = scalar_lea.sflag [#allocation3], %s565
        %s567 = sand.u32 %s224, 1
        %s568 = smul.addr %s567, 16
        %s569 = scalar_lea.vmem [#allocation2], %s568
        // Predicated region
        $region53: #{a_call__.1} parent=51 // pred_check
          %p570 = pneg %p234
        $region54: #{a_call__.1} parent=51 // pred_check_branch
          %572 = sbr.rel (%p570) target = $region56
        $region55: #{a_call__.1} parent=51 // pred_region
          %s573 = smul.u32 2, %s26
          %s575 = ssub.s32 256, 256
          %576 = vsyncadd %s566, %s575
          %s577 = smul.addr %s27, 2
          %s578 = sadd.s32 %s573, %s577
          %s579 = smul.addr %s578, 128
          %s580 = scalar_lea.hbm %s8, %s579
          %s581 = sshll.u32 %s569, 4
          %s582 = int_to_ptr.vmem [resolvable:$true] %s581
          %587 = dma.vmem_to_hbm [thread:$0]  %s582, 256, %s580, %s566, 128, 128, 8
        $region56: #{a_call__.1} parent=51 // pred_fallthru
          _
      $region52: #{a_call__.1} parent=5 // pred_fallthru
        _
      %p588 = scmp.le.s32.totalorder 2, %s17
      // Predicated region
      $region57: #{a_call__.1} parent=5 // pred_check
        %p589 = pneg %p588
      $region58: #{a_call__.1} parent=5 // pred_check_branch
        %591 = sbr.rel (%p589) target = $region60
      $region59: #{a_call__.1} parent=5 // pred_region
        %s592 = ssub.s32 %s17, 2
        // Predicated region
        $region61: #{a_call__.1} parent=59 // pred_check
          %p593 = pneg %p240
        $region62: #{a_call__.1} parent=59 // pred_check_branch
          %595 = sbr.rel (%p593) target = $region64
        $region63: #{a_call__.1} parent=59 // pred_region
          %s596 = sand.u32 %s225, 1
          %s597 = scalar_lea.sflag [#allocation3], %s596
          %s598 = sand.u32 %s225, 1
          %s599 = smul.addr %s598, 16
          %s600 = scalar_lea.vmem [#allocation2], %s599
          %601 = dma.done %s597, 256
        $region64: #{a_call__.1} parent=59 // pred_fallthru
          _
      $region60: #{a_call__.1} parent=5 // pred_fallthru
        _
    $region6: #{a_call__.1} parent=1 // loop_footer
      %s21 = sadd.s32 1, %s17
    $region7: #{a_call__.1} parent=1 // loop_footer_branch
      %16 = sbr.rel target = $region3
    $region8: #{a_call__.1} parent=1 // loop_exit
      _
    %602 = vsyncpa [#allocation3], 1
    %s603 = scalar_lea.sflag [#allocation3], 1
    %604 = vsyncpa %s603, 1

</llo_original>
